<compile_context>
chip_gen: v7x
topology: tpu7x:2x2x1
jax: 0.10.0
libtpu: 0.0.40
codegen_flags: <defaults>
</compile_context>

<pallas_src>
import functools

import jax
import jax.numpy as jnp
from jax import lax
from jax.experimental import pallas as pl
from jax.experimental.pallas import tpu as pltpu


# ----------------------------------------------------------------------------
# Fused kernel: per seq-chunk gate GEMMs + nonlinearities + serial recurrence.
# ----------------------------------------------------------------------------
def _gilr_fused_kernel(x_ref, wg_ref, bg_ref, wi_ref, bi_ref, o_ref,
                       g_buf, i_buf, h_ref, *, t_chunk, batch):
    """One grid step = one chunk of `t_chunk` timesteps (all batch rows).

    x_ref : (t_chunk*batch, K)  input chunk, timestep-major rows
    wg/wi : (K, L)              resident weights (constant index_map)
    bg/bi : (1, L)              resident biases
    o_ref : (t_chunk*batch, L)  hidden states for this chunk
    g_buf, i_buf : (t_chunk*batch, L) f32 VMEM scratch (gates never hit HBM)
    h_ref : (batch, L) f32 VMEM scratch carrying h across chunks
    """
    # h_0 = 0 at the first chunk.
    @pl.when(pl.program_id(0) == 0)
    def _():
        h_ref[...] = jnp.zeros(h_ref.shape, jnp.float32)

    # ---- Gate GEMMs for every timestep of the chunk at once (MXU) ----------
    x = x_ref[...]
    zg = jnp.dot(x, wg_ref[...], preferred_element_type=jnp.float32) + bg_ref[...]
    zi = jnp.dot(x, wi_ref[...], preferred_element_type=jnp.float32) + bi_ref[...]
    g_buf[...] = jax.nn.sigmoid(zg)
    i_buf[...] = jnp.tanh(zi)

    # ---- Serial elementwise recurrence over the chunk (VPU) ----------------
    # Statically unrolled for scheduler visibility; each step works on a dense
    # (batch, L) tile pulled from VMEM scratch with a static pl.ds offset.
    h = h_ref[...]
    for t in range(t_chunk):
        g_t = g_buf[pl.ds(t * batch, batch), :]
        i_t = i_buf[pl.ds(t * batch, batch), :]
        # h_new = g*h + (1-g)*i  ==  i + g*(h - i): one fewer multiply on the
        # serial critical path (rounding differs negligibly from the reference).
        h = i_t + g_t * (h - i_t)
        o_ref[pl.ds(t * batch, batch), :] = h.astype(o_ref.dtype)
    h_ref[...] = h


# ----------------------------------------------------------------------------
# Chunk-size selection (VMEM-budgeted, sublane-aligned rows).
# ----------------------------------------------------------------------------
def _pick_chunk(seq, batch, K, L, out_itemsize, cap=64, vmem_budget=12 << 20):
    cap = max(1, min(cap, seq))

    def fits(t):
        rows = t * batch
        need = rows * (2 * K * 4 + 2 * L * out_itemsize)   # pipelined x / out blocks
        need += rows * 2 * L * 4                           # g_buf + i_buf scratch
        need += rows * 2 * L * 4                           # zg / zi temporaries
        need += 2 * 2 * K * L * 4 + batch * L * 4          # weights + h carry
        return need <= vmem_budget

    aligned = [t for t in range(1, cap + 1) if (t * batch) % 8 == 0]
    if not aligned:
        # Tiny / odd shapes: a single whole-sequence block (block dims equal to
        # the full array dims are always layout-legal).
        return seq
    for t in reversed(aligned):
        if fits(t):
            return t
    return aligned[0]


# ----------------------------------------------------------------------------
# Wrapper
# ----------------------------------------------------------------------------
def gilr_net(x, wg, bg, wi, bi, *, recur_chunk=64):
    """x: (seq, batch, input); wg/wi: (input, lstm); bg/bi: (lstm,).
    Returns (seq, batch, lstm) hidden states with h_0 = 0 (PyTorch GILRNet)."""
    seq, batch, K = x.shape
    L = wg.shape[1]
    M = seq * batch
    out_dtype = x.dtype

    # Contiguous (metadata-only) flattening to timestep-major rows.
    x2d = x.reshape(M, K)
    bg2 = bg.reshape(1, L)
    bi2 = bi.reshape(1, L)

    t_chunk = _pick_chunk(seq, batch, K, L, jnp.dtype(out_dtype).itemsize,
                          cap=recur_chunk)
    rows = t_chunk * batch
    n_chunks = pl.cdiv(seq, t_chunk)   # partial tail block handled by Pallas

    xb = jnp.dtype(x.dtype).itemsize
    ob = jnp.dtype(out_dtype).itemsize
    cost = pl.CostEstimate(
        flops=2 * M * K * L * 2 + 4 * M * L,
        transcendentals=2 * M * L,
        bytes_accessed=M * K * xb + 2 * K * L * 4 + 2 * L * 4 + M * L * ob,
    )

    kernel = functools.partial(_gilr_fused_kernel, t_chunk=t_chunk, batch=batch)

    out2d = pl.pallas_call(
        kernel,
        out_shape=jax.ShapeDtypeStruct((M, L), out_dtype),
        grid_spec=pltpu.PrefetchScalarGridSpec(
            num_scalar_prefetch=0,
            grid=(n_chunks,),
            in_specs=[
                pl.BlockSpec((rows, K), lambda c: (c, 0)),   # x chunk
                pl.BlockSpec((K, L), lambda c: (0, 0)),      # wg (resident)
                pl.BlockSpec((1, L), lambda c: (0, 0)),      # bg (resident)
                pl.BlockSpec((K, L), lambda c: (0, 0)),      # wi (resident)
                pl.BlockSpec((1, L), lambda c: (0, 0)),      # bi (resident)
            ],
            out_specs=pl.BlockSpec((rows, L), lambda c: (c, 0)),
            scratch_shapes=[
                pltpu.VMEM((rows, L), jnp.float32),          # g_buf
                pltpu.VMEM((rows, L), jnp.float32),          # i_buf
                pltpu.VMEM((batch, L), jnp.float32),         # h carry
            ],
        ),
        compiler_params=pltpu.CompilerParams(
            # The chunk axis carries the recurrence -> must stay sequential.
            dimension_semantics=("arbitrary",),
        ),
        cost_estimate=cost,
    )(x2d, wg, bg2, wi, bi2)

    # TODO(synk): add a leading "parallel" grid axis over batch (or lstm) tiles
    # so v7x's two TensorCores each run an independent slice of the recurrence;
    # it degenerates to one tile for the small batches exercised here.
    # TODO(synk): a Blelloch-style parallel scan over the linear recurrence
    # would remove the remaining chunk serialization for very long sequences.
    return out2d.reshape(seq, batch, L)


# ----------------------------------------------------------------------------
# Pure-JAX reference matching the PyTorch forward.
# ----------------------------------------------------------------------------
def gilr_net_ref(x, wg, bg, wi, bi):
    batch = x.shape[1]
    lstm_size = wg.shape[1]

    def step(h_old, x_t):
        g = jax.nn.sigmoid(x_t @ wg + bg)
        i = jnp.tanh(x_t @ wi + bi)
        h_new = g * h_old + (1.0 - g) * i
        return h_new, h_new

    h0 = jnp.zeros((batch, lstm_size), dtype=x.dtype)
    _, hs = lax.scan(step, h0, x)
    return hs


def _make_case(key, seq, batch, input_size, lstm_size):
    kx, kwg, kbg, kwi, kbi = jax.random.split(key, 5)
    x = jax.random.normal(kx, (seq, batch, input_size), dtype=jnp.float32)
    bound = 1.0 / (input_size ** 0.5)   # PyTorch nn.Linear-style init
    wg = jax.random.uniform(kwg, (input_size, lstm_size), jnp.float32, -bound, bound)
    bg = jax.random.uniform(kbg, (lstm_size,), jnp.float32, -bound, bound)
    wi = jax.random.uniform(kwi, (input_size, lstm_size), jnp.float32, -bound, bound)
    bi = jax.random.uniform(kbi, (lstm_size,), jnp.float32, -bound, bound)
    return x, wg, bg, wi, bi


if __name__ == "__main__":
    key = jax.random.PRNGKey(0)
    k1, k2 = jax.random.split(key)

    # Tolerance covers TPU default-precision (bf16-pass) MXU GEMMs, which may
    # round differently in the Pallas kernel vs. the XLA reference; h is
    # tanh-bounded, so any structural bug would exceed this by orders of
    # magnitude.
    atol = rtol = 2e-3

    # Case 1: shapes implied by the module (seq divides the chunk evenly).
    x, wg, bg, wi, bi = _make_case(k1, seq=8, batch=4, input_size=16, lstm_size=32)
    out = jax.block_until_ready(gilr_net(x, wg, bg, wi, bi))
    ref = jax.block_until_ready(gilr_net_ref(x, wg, bg, wi, bi))
    assert out.shape == (8, 4, 32)
    assert jnp.allclose(out, ref, atol=atol, rtol=rtol)

    # Case 2: non-divisible seq_len exercises the pl.cdiv grid + partial tail
    # block; a 128-wide lstm exercises the lane-dense store path.
    x, wg, bg, wi, bi = _make_case(k2, seq=13, batch=2, input_size=16, lstm_size=128)
    out = jax.block_until_ready(gilr_net(x, wg, bg, wi, bi, recur_chunk=8))
    ref = jax.block_until_ready(gilr_net_ref(x, wg, bg, wi, bi))
    assert out.shape == (13, 2, 128)
    assert jnp.allclose(out, ref, atol=atol, rtol=rtol)

    print("KERNEL_OK")
</pallas_src>

<mosaic_0001>
module attributes {stable_mosaic.version = 11 : i64} {
  func.func @_gilr_fused_kernel(%arg0: i32, %arg1: memref<32x16xf32, #tpu.memory_space<vmem>>, %arg2: memref<16x32xf32, #tpu.memory_space<vmem>>, %arg3: memref<1x32xf32, #tpu.memory_space<vmem>>, %arg4: memref<16x32xf32, #tpu.memory_space<vmem>>, %arg5: memref<1x32xf32, #tpu.memory_space<vmem>>, %arg6: memref<32x32xf32, #tpu.memory_space<vmem>>, %arg7: memref<32x32xf32, #tpu.memory_space<vmem>>, %arg8: memref<32x32xf32, #tpu.memory_space<vmem>>, %arg9: memref<4x32xf32, #tpu.memory_space<vmem>>) attributes {dimension_semantics = [#tpu.dimension_semantics<arbitrary>], iteration_bounds = array<i64: 1>, scalar_prefetch = 0 : i64, scratch_operands = 3 : i64, tpu.core_type = #tpu.core_type<tc>, window_params = [{transform_indices = @transform_0, window_bounds = array<i64: 32, 16>}, {pipeline_mode = #tpu.pipeline_mode<synchronous>, transform_indices = @transform_1, window_bounds = array<i64: 16, 32>}, {pipeline_mode = #tpu.pipeline_mode<synchronous>, transform_indices = @transform_2, window_bounds = array<i64: 1, 32>}, {pipeline_mode = #tpu.pipeline_mode<synchronous>, transform_indices = @transform_3, window_bounds = array<i64: 16, 32>}, {pipeline_mode = #tpu.pipeline_mode<synchronous>, transform_indices = @transform_4, window_bounds = array<i64: 1, 32>}, {transform_indices = @transform_5, window_bounds = array<i64: 32, 32>}]} {
    %c0_i32 = arith.constant 0 : i32
    %0 = arith.cmpi eq, %arg0, %c0_i32 : i32
    %1 = arith.extui %0 : i1 to i32
    %c0_i32_0 = arith.constant 0 : i32
    %2 = arith.cmpi ne, %1, %c0_i32_0 : i32
    scf.if %2 {
      %cst_61 = arith.constant 0.000000e+00 : f32
      %72 = vector.broadcast %cst_61 : f32 to vector<4x32xf32>
      %c0_62 = arith.constant 0 : index
      %c0_63 = arith.constant 0 : index
      %73 = vector.load %arg9[%c0_62, %c0_63] : memref<4x32xf32, #tpu.memory_space<vmem>>, vector<4x32xf32>
      tpu.vector_store %arg9[%c0_62, %c0_63], %72 {strides = array<i32>} : memref<4x32xf32, #tpu.memory_space<vmem>>, vector<4x32xf32>,
    } else {
    }
    %c0 = arith.constant 0 : index
    %c0_1 = arith.constant 0 : index
    %3 = vector.load %arg1[%c0, %c0_1] : memref<32x16xf32, #tpu.memory_space<vmem>>, vector<32x16xf32>
    %c0_2 = arith.constant 0 : index
    %c0_3 = arith.constant 0 : index
    %4 = vector.load %arg2[%c0_2, %c0_3] : memref<16x32xf32, #tpu.memory_space<vmem>>, vector<16x32xf32>
    %cst = arith.constant dense<0.000000e+00> : vector<32x32xf32>
    %5 = tpu.matmul %3, %4, %cst {dimension_numbers = #tpu.dot_dimension_numbers<[1], [0], [0], [1], [0, 0, 1, 1], [], []>} : vector<32x16xf32>, vector<16x32xf32>, vector<32x32xf32> -> vector<32x32xf32>
    %c0_4 = arith.constant 0 : index
    %c0_5 = arith.constant 0 : index
    %6 = vector.load %arg3[%c0_4, %c0_5] : memref<1x32xf32, #tpu.memory_space<vmem>>, vector<1x32xf32>
    %7 = vector.broadcast %6 : vector<1x32xf32> to vector<32x32xf32>
    %8 = arith.addf %5, %7 : vector<32x32xf32>
    %c0_6 = arith.constant 0 : index
    %c0_7 = arith.constant 0 : index
    %9 = vector.load %arg4[%c0_6, %c0_7] : memref<16x32xf32, #tpu.memory_space<vmem>>, vector<16x32xf32>
    %cst_8 = arith.constant dense<0.000000e+00> : vector<32x32xf32>
    %10 = tpu.matmul %3, %9, %cst_8 {dimension_numbers = #tpu.dot_dimension_numbers<[1], [0], [0], [1], [0, 0, 1, 1], [], []>} : vector<32x16xf32>, vector<16x32xf32>, vector<32x32xf32> -> vector<32x32xf32>
    %c0_9 = arith.constant 0 : index
    %c0_10 = arith.constant 0 : index
    %11 = vector.load %arg5[%c0_9, %c0_10] : memref<1x32xf32, #tpu.memory_space<vmem>>, vector<1x32xf32>
    %12 = vector.broadcast %11 : vector<1x32xf32> to vector<32x32xf32>
    %13 = arith.addf %10, %12 : vector<32x32xf32>
    %14 = arith.negf %8 : vector<32x32xf32>
    %15 = math.exp %14 : vector<32x32xf32>
    %cst_11 = arith.constant 1.000000e+00 : f32
    %16 = vector.broadcast %cst_11 : f32 to vector<32x32xf32>
    %17 = arith.addf %16, %15 : vector<32x32xf32>
    %18 = arith.divf %16, %17 : vector<32x32xf32>
    %c0_12 = arith.constant 0 : index
    %c0_13 = arith.constant 0 : index
    %19 = vector.load %arg7[%c0_12, %c0_13] : memref<32x32xf32, #tpu.memory_space<vmem>>, vector<32x32xf32>
    tpu.vector_store %arg7[%c0_12, %c0_13], %18 {strides = array<i32>} : memref<32x32xf32, #tpu.memory_space<vmem>>, vector<32x32xf32>,
    %20 = math.tanh %13 : vector<32x32xf32>
    %c0_14 = arith.constant 0 : index
    %c0_15 = arith.constant 0 : index
    %21 = vector.load %arg8[%c0_14, %c0_15] : memref<32x32xf32, #tpu.memory_space<vmem>>, vector<32x32xf32>
    tpu.vector_store %arg8[%c0_14, %c0_15], %20 {strides = array<i32>} : memref<32x32xf32, #tpu.memory_space<vmem>>, vector<32x32xf32>,
    %c0_16 = arith.constant 0 : index
    %c0_17 = arith.constant 0 : index
    %22 = vector.load %arg9[%c0_16, %c0_17] : memref<4x32xf32, #tpu.memory_space<vmem>>, vector<4x32xf32>
    %c0_18 = arith.constant 0 : index
    %c0_19 = arith.constant 0 : index
    %23 = vector.load %arg7[%c0_18, %c0_19] : memref<32x32xf32, #tpu.memory_space<vmem>>, vector<4x32xf32>
    %c0_20 = arith.constant 0 : index
    %c0_21 = arith.constant 0 : index
    %24 = vector.load %arg8[%c0_20, %c0_21] : memref<32x32xf32, #tpu.memory_space<vmem>>, vector<4x32xf32>
    %25 = arith.subf %22, %24 : vector<4x32xf32>
    %26 = arith.mulf %23, %25 : vector<4x32xf32>
    %27 = arith.addf %24, %26 : vector<4x32xf32>
    %c0_22 = arith.constant 0 : index
    %c0_23 = arith.constant 0 : index
    %28 = vector.load %arg6[%c0_22, %c0_23] : memref<32x32xf32, #tpu.memory_space<vmem>>, vector<4x32xf32>
    tpu.vector_store %arg6[%c0_22, %c0_23], %27 {strides = array<i32>} : memref<32x32xf32, #tpu.memory_space<vmem>>, vector<4x32xf32>,
    %c4 = arith.constant 4 : index
    %c0_24 = arith.constant 0 : index
    %29 = vector.load %arg7[%c4, %c0_24] : memref<32x32xf32, #tpu.memory_space<vmem>>, vector<4x32xf32>
    %c4_25 = arith.constant 4 : index
    %c0_26 = arith.constant 0 : index
    %30 = vector.load %arg8[%c4_25, %c0_26] : memref<32x32xf32, #tpu.memory_space<vmem>>, vector<4x32xf32>
    %31 = arith.subf %27, %30 : vector<4x32xf32>
    %32 = arith.mulf %29, %31 : vector<4x32xf32>
    %33 = arith.addf %30, %32 : vector<4x32xf32>
    %c4_27 = arith.constant 4 : index
    %c0_28 = arith.constant 0 : index
    %34 = vector.load %arg6[%c4_27, %c0_28] : memref<32x32xf32, #tpu.memory_space<vmem>>, vector<4x32xf32>
    tpu.vector_store %arg6[%c4_27, %c0_28], %33 {strides = array<i32>} : memref<32x32xf32, #tpu.memory_space<vmem>>, vector<4x32xf32>,
    %c8 = arith.constant 8 : index
    %c0_29 = arith.constant 0 : index
    %35 = vector.load %arg7[%c8, %c0_29] : memref<32x32xf32, #tpu.memory_space<vmem>>, vector<4x32xf32>
    %c8_30 = arith.constant 8 : index
    %c0_31 = arith.constant 0 : index
    %36 = vector.load %arg8[%c8_30, %c0_31] : memref<32x32xf32, #tpu.memory_space<vmem>>, vector<4x32xf32>
    %37 = arith.subf %33, %36 : vector<4x32xf32>
    %38 = arith.mulf %35, %37 : vector<4x32xf32>
    %39 = arith.addf %36, %38 : vector<4x32xf32>
    %c8_32 = arith.constant 8 : index
    %c0_33 = arith.constant 0 : index
    %40 = vector.load %arg6[%c8_32, %c0_33] : memref<32x32xf32, #tpu.memory_space<vmem>>, vector<4x32xf32>
    tpu.vector_store %arg6[%c8_32, %c0_33], %39 {strides = array<i32>} : memref<32x32xf32, #tpu.memory_space<vmem>>, vector<4x32xf32>,
    %c12 = arith.constant 12 : index
    %c0_34 = arith.constant 0 : index
    %41 = vector.load %arg7[%c12, %c0_34] : memref<32x32xf32, #tpu.memory_space<vmem>>, vector<4x32xf32>
    %c12_35 = arith.constant 12 : index
    %c0_36 = arith.constant 0 : index
    %42 = vector.load %arg8[%c12_35, %c0_36] : memref<32x32xf32, #tpu.memory_space<vmem>>, vector<4x32xf32>
    %43 = arith.subf %39, %42 : vector<4x32xf32>
    %44 = arith.mulf %41, %43 : vector<4x32xf32>
    %45 = arith.addf %42, %44 : vector<4x32xf32>
    %c12_37 = arith.constant 12 : index
    %c0_38 = arith.constant 0 : index
    %46 = vector.load %arg6[%c12_37, %c0_38] : memref<32x32xf32, #tpu.memory_space<vmem>>, vector<4x32xf32>
    tpu.vector_store %arg6[%c12_37, %c0_38], %45 {strides = array<i32>} : memref<32x32xf32, #tpu.memory_space<vmem>>, vector<4x32xf32>,
    %c16 = arith.constant 16 : index
    %c0_39 = arith.constant 0 : index
    %47 = vector.load %arg7[%c16, %c0_39] : memref<32x32xf32, #tpu.memory_space<vmem>>, vector<4x32xf32>
    %c16_40 = arith.constant 16 : index
    %c0_41 = arith.constant 0 : index
    %48 = vector.load %arg8[%c16_40, %c0_41] : memref<32x32xf32, #tpu.memory_space<vmem>>, vector<4x32xf32>
    %49 = arith.subf %45, %48 : vector<4x32xf32>
    %50 = arith.mulf %47, %49 : vector<4x32xf32>
    %51 = arith.addf %48, %50 : vector<4x32xf32>
    %c16_42 = arith.constant 16 : index
    %c0_43 = arith.constant 0 : index
    %52 = vector.load %arg6[%c16_42, %c0_43] : memref<32x32xf32, #tpu.memory_space<vmem>>, vector<4x32xf32>
    tpu.vector_store %arg6[%c16_42, %c0_43], %51 {strides = array<i32>} : memref<32x32xf32, #tpu.memory_space<vmem>>, vector<4x32xf32>,
    %c20 = arith.constant 20 : index
    %c0_44 = arith.constant 0 : index
    %53 = vector.load %arg7[%c20, %c0_44] : memref<32x32xf32, #tpu.memory_space<vmem>>, vector<4x32xf32>
    %c20_45 = arith.constant 20 : index
    %c0_46 = arith.constant 0 : index
    %54 = vector.load %arg8[%c20_45, %c0_46] : memref<32x32xf32, #tpu.memory_space<vmem>>, vector<4x32xf32>
    %55 = arith.subf %51, %54 : vector<4x32xf32>
    %56 = arith.mulf %53, %55 : vector<4x32xf32>
    %57 = arith.addf %54, %56 : vector<4x32xf32>
    %c20_47 = arith.constant 20 : index
    %c0_48 = arith.constant 0 : index
    %58 = vector.load %arg6[%c20_47, %c0_48] : memref<32x32xf32, #tpu.memory_space<vmem>>, vector<4x32xf32>
    tpu.vector_store %arg6[%c20_47, %c0_48], %57 {strides = array<i32>} : memref<32x32xf32, #tpu.memory_space<vmem>>, vector<4x32xf32>,
    %c24 = arith.constant 24 : index
    %c0_49 = arith.constant 0 : index
    %59 = vector.load %arg7[%c24, %c0_49] : memref<32x32xf32, #tpu.memory_space<vmem>>, vector<4x32xf32>
    %c24_50 = arith.constant 24 : index
    %c0_51 = arith.constant 0 : index
    %60 = vector.load %arg8[%c24_50, %c0_51] : memref<32x32xf32, #tpu.memory_space<vmem>>, vector<4x32xf32>
    %61 = arith.subf %57, %60 : vector<4x32xf32>
    %62 = arith.mulf %59, %61 : vector<4x32xf32>
    %63 = arith.addf %60, %62 : vector<4x32xf32>
    %c24_52 = arith.constant 24 : index
    %c0_53 = arith.constant 0 : index
    %64 = vector.load %arg6[%c24_52, %c0_53] : memref<32x32xf32, #tpu.memory_space<vmem>>, vector<4x32xf32>
    tpu.vector_store %arg6[%c24_52, %c0_53], %63 {strides = array<i32>} : memref<32x32xf32, #tpu.memory_space<vmem>>, vector<4x32xf32>,
    %c28 = arith.constant 28 : index
    %c0_54 = arith.constant 0 : index
    %65 = vector.load %arg7[%c28, %c0_54] : memref<32x32xf32, #tpu.memory_space<vmem>>, vector<4x32xf32>
    %c28_55 = arith.constant 28 : index
    %c0_56 = arith.constant 0 : index
    %66 = vector.load %arg8[%c28_55, %c0_56] : memref<32x32xf32, #tpu.memory_space<vmem>>, vector<4x32xf32>
    %67 = arith.subf %63, %66 : vector<4x32xf32>
    %68 = arith.mulf %65, %67 : vector<4x32xf32>
    %69 = arith.addf %66, %68 : vector<4x32xf32>
    %c28_57 = arith.constant 28 : index
    %c0_58 = arith.constant 0 : index
    %70 = vector.load %arg6[%c28_57, %c0_58] : memref<32x32xf32, #tpu.memory_space<vmem>>, vector<4x32xf32>
    tpu.vector_store %arg6[%c28_57, %c0_58], %69 {strides = array<i32>} : memref<32x32xf32, #tpu.memory_space<vmem>>, vector<4x32xf32>,
    %c0_59 = arith.constant 0 : index
    %c0_60 = arith.constant 0 : index
    %71 = vector.load %arg9[%c0_59, %c0_60] : memref<4x32xf32, #tpu.memory_space<vmem>>, vector<4x32xf32>
    tpu.vector_store %arg9[%c0_59, %c0_60], %69 {strides = array<i32>} : memref<4x32xf32, #tpu.memory_space<vmem>>, vector<4x32xf32>,
    return
  }
  func.func @transform_0(%arg0: i32) -> (i32, i32) {
    %c0_i32 = arith.constant 0 : i32
    %c0_i32_0 = arith.constant 0 : i32
    return %arg0, %c0_i32 : i32, i32
  }
  func.func @transform_1(%arg0: i32) -> (i32, i32) {
    %c0_i32 = arith.constant 0 : i32
    %c0_i32_0 = arith.constant 0 : i32
    %c0_i32_1 = arith.constant 0 : i32
    return %c0_i32, %c0_i32_0 : i32, i32
  }
  func.func @transform_2(%arg0: i32) -> (i32, i32) {
    %c0_i32 = arith.constant 0 : i32
    %c0_i32_0 = arith.constant 0 : i32
    %c0_i32_1 = arith.constant 0 : i32
    return %c0_i32, %c0_i32_0 : i32, i32
  }
  func.func @transform_3(%arg0: i32) -> (i32, i32) {
    %c0_i32 = arith.constant 0 : i32
    %c0_i32_0 = arith.constant 0 : i32
    %c0_i32_1 = arith.constant 0 : i32
    return %c0_i32, %c0_i32_0 : i32, i32
  }
  func.func @transform_4(%arg0: i32) -> (i32, i32) {
    %c0_i32 = arith.constant 0 : i32
    %c0_i32_0 = arith.constant 0 : i32
    %c0_i32_1 = arith.constant 0 : i32
    return %c0_i32, %c0_i32_0 : i32, i32
  }
  func.func @transform_5(%arg0: i32) -> (i32, i32) {
    %c0_i32 = arith.constant 0 : i32
    %c0_i32_0 = arith.constant 0 : i32
    return %arg0, %c0_i32 : i32, i32
  }
}

</mosaic_0001>

<llo_original>
// kernel: tpu_custom_call.1
$region0: #{tpu_custom_call.1}
  #allocation0 [shape = 'u32[]', space=smem, size = 0x4, offset = 0x4, fixed_abs, tag = 'smem constant byte address 0x4 - core index']
  #allocation1 [shape = 'u32[144,128]{1,0:T(1,128)}', space=vmem, size = 0x12000, scoped, tag = 'internal scratch']
  #allocation2 [shape = 'f32[32,32]{1,0:T(8,128)}', space=vmem, size = 0x4000, scoped, tag = 'scratch operand']
  #allocation3 [shape = 'f32[32,32]{1,0:T(8,128)}', space=vmem, size = 0x4000, scoped, tag = 'scratch operand']
  #allocation4 [shape = 'f32[4,32]{1,0:T(4,128)}', space=vmem, size = 0x800, scoped, tag = 'scratch operand']
  %s0 = inlined_call_operand.vmem [shape: f32[32,16], index: 0, kind: input, shape index: {}]
  %s1 = inlined_call_operand.vmem [shape: f32[16,32], index: 1, kind: input, shape index: {}]
  %s2 = inlined_call_operand.vmem [shape: f32[1,32], index: 2, kind: input, shape index: {}]
  %s3 = inlined_call_operand.vmem [shape: f32[16,32], index: 3, kind: input, shape index: {}]
  %s4 = inlined_call_operand.vmem [shape: f32[1,32], index: 4, kind: input, shape index: {}]
  %s5 = inlined_call_operand.hbm [shape: f32[32,32], index: 5, kind: output, shape index: {}]
  %s6 = sld [smem:[#allocation0]]
  $region34: #{tpu_custom_call.1} parent=0
    _
  %s8 = ssub.s32 1, %s6
  %s9 = scalar_select 0, %s8, %s6
  $region1: #{tpu_custom_call.1} parent=0
    #allocation5 [shape = 'u8[16384]{0}', space=vmem, size = 0x4000, scoped, tag = 'output window, operand 0, single buffered']
    #allocation6 [shape = 's32[1]{0}', space=sflag, size = 0x4, scoped, tag = 'scoped memory for tpu_custom_call.1']
    %10 = vsyncpa [#allocation6], 0
    // Predicated region
    $region2: #{tpu_custom_call.1} parent=1 // pred_check
      _
    $region3: #{tpu_custom_call.1} parent=1 // pred_check_branch
      %12 = sbr.rel (0) target = $region5
    $region4: #{tpu_custom_call.1} parent=1 // pred_region
      _
    $region5: #{tpu_custom_call.1} parent=1 // pred_fallthru
      _
    // Predicated region
    $region6: #{tpu_custom_call.1} parent=1 // pred_check
      _
    $region7: #{tpu_custom_call.1} parent=1 // pred_check_branch
      %14 = sbr.rel (0) target = $region9
    $region8: #{tpu_custom_call.1} parent=1 // pred_region
      _
    $region9: #{tpu_custom_call.1} parent=1 // pred_fallthru
      _
    // Predicated region
    $region10: #{tpu_custom_call.1} parent=1 // pred_check
      _
    $region11: #{tpu_custom_call.1} parent=1 // pred_check_branch
      %16 = sbr.rel (0) target = $region13
    $region12: #{tpu_custom_call.1} parent=1 // pred_region
      _
    $region13: #{tpu_custom_call.1} parent=1 // pred_fallthru
      _
    // Predicated region
    $region14: #{tpu_custom_call.1} parent=1 // pred_check
      _
    $region15: #{tpu_custom_call.1} parent=1 // pred_check_branch
      %18 = sbr.rel (0) target = $region17
    $region16: #{tpu_custom_call.1} parent=1 // pred_region
      _
    $region17: #{tpu_custom_call.1} parent=1 // pred_fallthru
      _
    // Predicated region
    $region18: #{tpu_custom_call.1} parent=1 // pred_check
      _
    $region19: #{tpu_custom_call.1} parent=1 // pred_check_branch
      %20 = sbr.rel (0) target = $region21
    $region20: #{tpu_custom_call.1} parent=1 // pred_region
      _
    $region21: #{tpu_custom_call.1} parent=1 // pred_fallthru
      _
    %p21 = scmp.eq.s32.totalorder 0, 0
    // Predicated region
    $region22: #{tpu_custom_call.1} parent=1 // pred_check
      %p22 = pneg %p21
    $region23: #{tpu_custom_call.1} parent=1 // pred_check_branch
      %24 = sbr.rel (%p22) target = $region25
    $region24: #{tpu_custom_call.1} parent=1 // pred_region
      %vm25 = vcmask 257024
      %26 = vst.msk [vmem:[#allocation4] sm:$0xf] %vm25, 0.0
    $region25: #{tpu_custom_call.1} parent=1 // pred_fallthru
      _
    %v27 = vld [vmem:[%s0] sm:$0xff]
    %v28 = vld [vmem:[%s0 + $0x8] sm:$0xff]
    %v29 = vld [vmem:[%s0 + $0x10] sm:$0xff]
    %v30 = vld [vmem:[%s0 + $0x18] sm:$0xff]
    %v31 = vld [vmem:[%s1] sm:$0xff]
    %v32 = vld [vmem:[%s1 + $0x8] sm:$0xff]
    %v33 = vld [vmem:[%s2] sm:$0x1]
    %v35 = vlaneseq
    %v36 = vshrl.u32 %v35, 7
    %v37 = vsub.s32 0, %v36
    %v38 = vrot.slane %v33, %v37
    %vm40 = vcmask 130048
    %v42 = vsel %vm40, %v27, 0
    %v45 = vsel %vm40, %v28, 0
    %v48 = vsel %vm40, %v29, 0
    %v51 = vsel %vm40, %v30, 0
    %53 = vmatprep.subr.mxu0 0.0
    %54 = vmatpush1.msra.mxu0 %v31
    %55 = vmatprep.subr.mxu0 0.0
    %56 = vmatpush1.msra.mxu0 %v32
    %57 = vmatprep.subr.mxu0 0.0
    %58 = vmatpush1.msra.mxu0 0.0
    %59 = vmatprep.subr.mxu0 0.0
    %60 = vmatpush1.msra.mxu0 0.0
    %61 = vmatprep.subr.mxu0 0.0
    %62 = vmatpush1.msra.mxu0 0.0
    %63 = vmatprep.subr.mxu0 0.0
    %64 = vmatpush1.msra.mxu0 0.0
    %65 = vmatprep.subr.mxu0 0.0
    %66 = vmatpush1.msra.mxu0 0.0
    %67 = vmatprep.subr.mxu0 0.0
    %68 = vmatpush1.msra.mxu0 0.0
    %69 = vmatprep.subr.mxu0 0.0
    %70 = vmatpush1.msra.mxu0 0.0
    %71 = vmatprep.subr.mxu0 0.0
    %72 = vmatpush1.msra.mxu0 0.0
    %73 = vmatprep.subr.mxu0 0.0
    %74 = vmatpush1.msra.mxu0 0.0
    %75 = vmatprep.subr.mxu0 0.0
    %76 = vmatpush1.msra.mxu0 0.0
    %77 = vmatprep.subr.mxu0 0.0
    %78 = vmatpush1.msra.mxu0 0.0
    %79 = vmatprep.subr.mxu0 0.0
    %80 = vmatpush1.msra.mxu0 0.0
    %81 = vmatprep.subr.mxu0 0.0
    %82 = vmatpush1.msra.mxu0 0.0
    %83 = vmatprep.subr.mxu0 0.0
    %84 = vmatpush1.msra.mxu0 0.0
    %85 = vmatprep.subr.mxu0 0.0
    %86 = vmatpush1.msra.mxu0 0.0
    %87 = vmatprep.subr.mxu0 0.0
    %88 = vmatpush1.msra.mxu0 0.0
    %89 = vmatprep.subr.mxu0 0.0
    %90 = vmatpush1.msra.mxu0 0.0
    %91 = vmatprep.subr.mxu0 0.0
    %92 = vmatpush1.msra.mxu0 0.0
    %93 = vmatprep.subr.mxu0 0.0
    %94 = vmatpush1.msra.mxu0 0.0
    %95 = vmatprep.subr.mxu0 0.0
    %96 = vmatpush1.msra.mxu0 0.0
    %97 = vmatprep.subr.mxu0 0.0
    %98 = vmatpush1.msra.mxu0 0.0
    %99 = vmatprep.subr.mxu0 0.0
    %100 = vmatpush1.msra.mxu0 0.0
    %101 = vmatprep.subr.mxu0 0.0
    %102 = vmatpush1.msra.mxu0 0.0
    %103 = vmatprep.subr.mxu0 0.0
    %104 = vmatpush1.msra.mxu0 0.0
    %105 = vmatprep.subr.mxu0 0.0
    %106 = vmatpush1.msra.mxu0 0.0
    %107 = vmatprep.subr.mxu0 0.0
    %108 = vmatpush1.msra.mxu0 0.0
    %109 = vmatprep.subr.mxu0 0.0
    %110 = vmatpush1.msra.mxu0 0.0
    %111 = vmatprep.subr.mxu0 0.0
    %112 = vmatpush1.msra.mxu0 0.0
    %113 = vmatprep.subr.mxu0 0.0
    %114 = vmatpush1.msra.mxu0 0.0
    %115 = vmatprep.subr.mxu0 0.0
    %116 = vmatpush1.msra.mxu0 0.0
    %117 = vmatprep.mubr.f32.mxu0 0.0
    %118 = vmatmul.mubr.f32.gmra.mrb[0].mxu0 %v42
    %v119 = vpop.f32.mrb[0].mxu0
    %v120 = vadd.f32 %v38, %v119
    %v121 = vpop.f32.mrb[0].mxu0
    %122 = vmatprep.mubr.f32.mxu0 0.0
    %123 = vmatmul.mubr.f32.gmra.mrb[0].mxu0 %v45
    %v124 = vpop.f32.mrb[0].mxu0
    %v125 = vadd.f32 %v38, %v124
    %v126 = vpop.f32.mrb[0].mxu0
    %127 = vmatprep.mubr.f32.mxu0 0.0
    %128 = vmatmul.mubr.f32.gmra.mrb[0].mxu0 %v48
    %v129 = vpop.f32.mrb[0].mxu0
    %v130 = vadd.f32 %v38, %v129
    %v131 = vpop.f32.mrb[0].mxu0
    %132 = vmatprep.mubr.f32.mxu0 0.0
    %133 = vmatmul.mubr.f32.gmra.mrb[0].mxu0 %v51
    %v134 = vpop.f32.mrb[0].mxu0
    %v135 = vadd.f32 %v38, %v134
    %v136 = vpop.f32.mrb[0].mxu0
    %137 = vdwg.mxu0
    %v138 = vld [vmem:[%s3] sm:$0xff]
    %v139 = vld [vmem:[%s3 + $0x8] sm:$0xff]
    %v140 = vld [vmem:[%s4] sm:$0x1]
    %v142 = vlaneseq
    %v143 = vshrl.u32 %v142, 7
    %v144 = vsub.s32 0, %v143
    %v145 = vrot.slane %v140, %v144
    %147 = vmatprep.subr.mxu0 0.0
    %148 = vmatpush1.msra.mxu0 %v138
    %149 = vmatprep.subr.mxu0 0.0
    %150 = vmatpush1.msra.mxu0 %v139
    %151 = vmatprep.subr.mxu0 0.0
    %152 = vmatpush1.msra.mxu0 0.0
    %153 = vmatprep.subr.mxu0 0.0
    %154 = vmatpush1.msra.mxu0 0.0
    %155 = vmatprep.subr.mxu0 0.0
    %156 = vmatpush1.msra.mxu0 0.0
    %157 = vmatprep.subr.mxu0 0.0
    %158 = vmatpush1.msra.mxu0 0.0
    %159 = vmatprep.subr.mxu0 0.0
    %160 = vmatpush1.msra.mxu0 0.0
    %161 = vmatprep.subr.mxu0 0.0
    %162 = vmatpush1.msra.mxu0 0.0
    %163 = vmatprep.subr.mxu0 0.0
    %164 = vmatpush1.msra.mxu0 0.0
    %165 = vmatprep.subr.mxu0 0.0
    %166 = vmatpush1.msra.mxu0 0.0
    %167 = vmatprep.subr.mxu0 0.0
    %168 = vmatpush1.msra.mxu0 0.0
    %169 = vmatprep.subr.mxu0 0.0
    %170 = vmatpush1.msra.mxu0 0.0
    %171 = vmatprep.subr.mxu0 0.0
    %172 = vmatpush1.msra.mxu0 0.0
    %173 = vmatprep.subr.mxu0 0.0
    %174 = vmatpush1.msra.mxu0 0.0
    %175 = vmatprep.subr.mxu0 0.0
    %176 = vmatpush1.msra.mxu0 0.0
    %177 = vmatprep.subr.mxu0 0.0
    %178 = vmatpush1.msra.mxu0 0.0
    %179 = vmatprep.subr.mxu0 0.0
    %180 = vmatpush1.msra.mxu0 0.0
    %181 = vmatprep.subr.mxu0 0.0
    %182 = vmatpush1.msra.mxu0 0.0
    %183 = vmatprep.subr.mxu0 0.0
    %184 = vmatpush1.msra.mxu0 0.0
    %185 = vmatprep.subr.mxu0 0.0
    %186 = vmatpush1.msra.mxu0 0.0
    %187 = vmatprep.subr.mxu0 0.0
    %188 = vmatpush1.msra.mxu0 0.0
    %189 = vmatprep.subr.mxu0 0.0
    %190 = vmatpush1.msra.mxu0 0.0
    %191 = vmatprep.subr.mxu0 0.0
    %192 = vmatpush1.msra.mxu0 0.0
    %193 = vmatprep.subr.mxu0 0.0
    %194 = vmatpush1.msra.mxu0 0.0
    %195 = vmatprep.subr.mxu0 0.0
    %196 = vmatpush1.msra.mxu0 0.0
    %197 = vmatprep.subr.mxu0 0.0
    %198 = vmatpush1.msra.mxu0 0.0
    %199 = vmatprep.subr.mxu0 0.0
    %200 = vmatpush1.msra.mxu0 0.0
    %201 = vmatprep.subr.mxu0 0.0
    %202 = vmatpush1.msra.mxu0 0.0
    %203 = vmatprep.subr.mxu0 0.0
    %204 = vmatpush1.msra.mxu0 0.0
    %205 = vmatprep.subr.mxu0 0.0
    %206 = vmatpush1.msra.mxu0 0.0
    %207 = vmatprep.subr.mxu0 0.0
    %208 = vmatpush1.msra.mxu0 0.0
    %209 = vmatprep.subr.mxu0 0.0
    %210 = vmatpush1.msra.mxu0 0.0
    %211 = vmatprep.mubr.f32.mxu0 0.0
    %212 = vmatmul.mubr.f32.gmra.mrb[0].mxu0 %v42
    %v213 = vpop.f32.mrb[0].mxu0
    %v214 = vadd.f32 %v145, %v213
    %v215 = vpop.f32.mrb[0].mxu0
    %216 = vmatprep.mubr.f32.mxu0 0.0
    %217 = vmatmul.mubr.f32.gmra.mrb[0].mxu0 %v45
    %v218 = vpop.f32.mrb[0].mxu0
    %v219 = vadd.f32 %v145, %v218
    %v220 = vpop.f32.mrb[0].mxu0
    %221 = vmatprep.mubr.f32.mxu0 0.0
    %222 = vmatmul.mubr.f32.gmra.mrb[0].mxu0 %v48
    %v223 = vpop.f32.mrb[0].mxu0
    %v224 = vadd.f32 %v145, %v223
    %v225 = vpop.f32.mrb[0].mxu0
    %226 = vmatprep.mubr.f32.mxu0 0.0
    %227 = vmatmul.mubr.f32.gmra.mrb[0].mxu0 %v51
    %v228 = vpop.f32.mrb[0].mxu0
    %v229 = vadd.f32 %v145, %v228
    %v230 = vpop.f32.mrb[0].mxu0
    %231 = vdwg.mxu0
    %v232 = vxor.u32 %v120, 2147483648
    %v233 = vxor.u32 %v125, 2147483648
    %v234 = vxor.u32 %v130, 2147483648
    %v235 = vxor.u32 %v135, 2147483648
    %v236 = vmul.f32 %v232, 1.442695
    %v237 = vpow.pop %v236
    %v238 = vmul.f32 %v233, 1.442695
    %v239 = vpow.pop %v238
    %v240 = vmul.f32 %v234, 1.442695
    %v241 = vpow.pop %v240
    %v242 = vmul.f32 %v235, 1.442695
    %v243 = vpow.pop %v242
    %v244 = vadd.f32 %v237, 1.0
    %v245 = vadd.f32 %v239, 1.0
    %v246 = vadd.f32 %v241, 1.0
    %v247 = vadd.f32 %v243, 1.0
    %v248 = vrcp.pop %v244
    %v249 = vmul.f32 1.0, %v248
    %v250 = vrcp.pop %v245
    %v251 = vmul.f32 1.0, %v250
    %v252 = vrcp.pop %v246
    %v253 = vmul.f32 1.0, %v252
    %v254 = vrcp.pop %v247
    %v255 = vmul.f32 1.0, %v254
    %vm256 = vcmask 261120
    %257 = vst.msk [vmem:[#allocation2] sm:$0xff] %vm256, %v249
    %258 = vst.msk [vmem:[#allocation2 + $0x8] sm:$0xff] %vm256, %v251
    %259 = vst.msk [vmem:[#allocation2 + $0x10] sm:$0xff] %vm256, %v253
    %260 = vst.msk [vmem:[#allocation2 + $0x18] sm:$0xff] %vm256, %v255
    %v261 = vtanh.pop %v214
    %v262 = vtanh.pop %v219
    %v263 = vtanh.pop %v224
    %v264 = vtanh.pop %v229
    %265 = vst.msk [vmem:[#allocation3] sm:$0xff] %vm256, %v261
    %266 = vst.msk [vmem:[#allocation3 + $0x8] sm:$0xff] %vm256, %v262
    %267 = vst.msk [vmem:[#allocation3 + $0x10] sm:$0xff] %vm256, %v263
    %268 = vst.msk [vmem:[#allocation3 + $0x18] sm:$0xff] %vm256, %v264
    %v269 = vld [vmem:[#allocation4] sm:$0xf]
    %v270 = vld [vmem:[#allocation2] sm:$0xf]
    %v271 = vld [vmem:[#allocation3] sm:$0xf]
    %v272 = vsub.f32 %v269, %v271
    %v273 = vmul.f32 %v270, %v272
    %v274 = vadd.f32 %v271, %v273
    %vm275 = vcmask 257024
    %276 = vst.msk [vmem:[#allocation5] sm:$0xf] %vm275, %v274
    %v277 = vld [vmem:[#allocation2 + $0x4] sm:$0xf]
    %v278 = vld [vmem:[#allocation3 + $0x4] sm:$0xf]
    %v279 = vsub.f32 %v274, %v278
    %v280 = vmul.f32 %v277, %v279
    %v281 = vadd.f32 %v278, %v280
    %282 = vst.msk [vmem:[#allocation5 + $0x4] sm:$0xf] %vm275, %v281
    %v283 = vld [vmem:[#allocation2 + $0x8] sm:$0xf]
    %v284 = vld [vmem:[#allocation3 + $0x8] sm:$0xf]
    %v285 = vsub.f32 %v281, %v284
    %v286 = vmul.f32 %v283, %v285
    %v287 = vadd.f32 %v284, %v286
    %288 = vst.msk [vmem:[#allocation5 + $0x8] sm:$0xf] %vm275, %v287
    %v289 = vld [vmem:[#allocation2 + $0xc] sm:$0xf]
    %v290 = vld [vmem:[#allocation3 + $0xc] sm:$0xf]
    %v291 = vsub.f32 %v287, %v290
    %v292 = vmul.f32 %v289, %v291
    %v293 = vadd.f32 %v290, %v292
    %294 = vst.msk [vmem:[#allocation5 + $0xc] sm:$0xf] %vm275, %v293
    %v295 = vld [vmem:[#allocation2 + $0x10] sm:$0xf]
    %v296 = vld [vmem:[#allocation3 + $0x10] sm:$0xf]
    %v297 = vsub.f32 %v293, %v296
    %v298 = vmul.f32 %v295, %v297
    %v299 = vadd.f32 %v296, %v298
    %300 = vst.msk [vmem:[#allocation5 + $0x10] sm:$0xf] %vm275, %v299
    %v301 = vld [vmem:[#allocation2 + $0x14] sm:$0xf]
    %v302 = vld [vmem:[#allocation3 + $0x14] sm:$0xf]
    %v303 = vsub.f32 %v299, %v302
    %v304 = vmul.f32 %v301, %v303
    %v305 = vadd.f32 %v302, %v304
    %306 = vst.msk [vmem:[#allocation5 + $0x14] sm:$0xf] %vm275, %v305
    %v307 = vld [vmem:[#allocation2 + $0x18] sm:$0xf]
    %v308 = vld [vmem:[#allocation3 + $0x18] sm:$0xf]
    %v309 = vsub.f32 %v305, %v308
    %v310 = vmul.f32 %v307, %v309
    %v311 = vadd.f32 %v308, %v310
    %312 = vst.msk [vmem:[#allocation5 + $0x18] sm:$0xf] %vm275, %v311
    %v313 = vld [vmem:[#allocation2 + $0x1c] sm:$0xf]
    %v314 = vld [vmem:[#allocation3 + $0x1c] sm:$0xf]
    %v315 = vsub.f32 %v311, %v314
    %v316 = vmul.f32 %v313, %v315
    %v317 = vadd.f32 %v314, %v316
    %318 = vst.msk [vmem:[#allocation5 + $0x1c] sm:$0xf] %vm275, %v317
    %319 = vst.msk [vmem:[#allocation4] sm:$0xf] %vm275, %v317
    // Predicated region
    $region26: #{tpu_custom_call.1} parent=1 // pred_check
      _
    $region27: #{tpu_custom_call.1} parent=1 // pred_check_branch
      %321 = sbr.rel (0) target = $region29
    $region28: #{tpu_custom_call.1} parent=1 // pred_region
      %s323 = ssub.s32 512, 512
      %324 = vsyncadd [#allocation6], %s323
      %s325 = sshll.u32 [#allocation5], 4
      %s326 = int_to_ptr.vmem [resolvable:$true] %s325
      %331 = dma.vmem_to_hbm [thread:$0]  %s326, 512, %s5, [#allocation6], 128, 128, 8
    $region29: #{tpu_custom_call.1} parent=1 // pred_fallthru
      _
    // Predicated region
    $region30: #{tpu_custom_call.1} parent=1 // pred_check
      _
    $region31: #{tpu_custom_call.1} parent=1 // pred_check_branch
      %333 = sbr.rel (0) target = $region33
    $region32: #{tpu_custom_call.1} parent=1 // pred_region
      %334 = dma.done [#allocation6], 512
    $region33: #{tpu_custom_call.1} parent=1 // pred_fallthru
      _
    %335 = vsyncpa [#allocation6], 1

</llo_original>
